<compile_context>
chip_gen: v7x
topology: tpu7x:2x2x1
jax: 0.10.0
libtpu: 0.0.40
codegen_flags: <defaults>
</compile_context>

<pallas_src>
import functools

import jax
import jax.numpy as jnp
from jax import lax
from jax.experimental import pallas as pl
from jax.experimental.pallas import tpu as pltpu

RATIOS = [[1.0, 2.0, 0.5]] * 5
SIZES = [[0.2, 0.272], [0.37, 0.447], [0.54, 0.619], [0.71, 0.79], [0.88, 0.961]]
NUM_ANCHORS = len(SIZES[0]) + len(RATIOS[0]) - 1  # = 4
NUM_CLASS = 1
BN_EPS = 1e-5


def _round_up(x, m):
    return (x + m - 1) // m * m


def _cdiv(a, b):
    return -(-a // b)


# ----------------------------- Pallas conv kernel -----------------------------
def _conv3x3_kernel(x_ref, w_ref, b_ref, o_ref, *, wp, ti, n_inner, relu, merge_kx):
    """Shift-add 3x3 conv over a row-flattened zero-padded bf16 activation.

    x_ref: (M_in, Cin)       bf16  full padded activation, resident in VMEM
    w_ref: (3, Cin, 3*Cout)  bf16  per-ky [kx=0 | kx=1 | kx=2] concatenated taps
    b_ref: (1, Cout)         f32   BN/bias folded
    o_ref: (TM, Cout)              output tile, TM = n_inner * ti
    Output row q reads input rows q + ky*wp + kx for the 9 taps.
    """
    cout = o_ref.shape[-1]
    base = pl.program_id(0) * (n_inner * ti)
    bias = b_ref[...]

    def compute_tile(row0):
        acc = jnp.zeros((ti, cout), jnp.float32)
        for ky in range(3):                                   # static unroll
            start = pl.multiple_of(row0 + ky * wp, 16)
            slab = x_ref[pl.ds(start, ti + 8), :]             # (ti+8, Cin) bf16
            if merge_kx:
                # One wide MXU matmul per ky (3x fewer pushes, better N fill);
                # the 3 column groups are re-aligned with +0/+1/+2 row shifts.
                wide = jnp.dot(slab, w_ref[ky],
                               preferred_element_type=jnp.float32)  # (ti+8, 3*Cout)
                acc = (acc + wide[0:ti, 0:cout]
                       + wide[1:ti + 1, cout:2 * cout]
                       + wide[2:ti + 2, 2 * cout:3 * cout])
            else:
                # Cout == 128: 3*Cout would blow the vreg file; per-tap dots
                # (Cout=128 already fills the MXU N dim reasonably).
                for kx in range(3):
                    acc = acc + jnp.dot(
                        slab[kx:kx + ti, :],
                        w_ref[ky, :, kx * cout:(kx + 1) * cout],
                        preferred_element_type=jnp.float32)
        y = acc + bias
        if relu:
            y = jnp.maximum(y, 0.0)
        return y.astype(o_ref.dtype)

    if n_inner == 1:
        o_ref[...] = compute_tile(base)
    else:
        # fori_loop (not a static unroll) bounds the live range of the f32
        # accumulator so the larger TM does not spill the vreg file.
        def body(s, carry):
            off = pl.multiple_of(s * ti, ti)
            o_ref[pl.ds(off, ti), :] = compute_tile(base + off)
            return carry

        lax.fori_loop(0, n_inner, body, 0)


def conv3x3(x, w, bias, scale=None, *, relu, out_dtype=jnp.bfloat16):
    """3x3 / stride-1 / pad-1 conv + folded per-channel affine (+ optional ReLU).

    x: (N, H, W, Cin), w: (3, 3, Cin, Cout) f32, bias: (Cout,) f32.
    `scale` (Cout,) is folded into the weights (BN scale). bf16 operands,
    f32 accumulation/epilogue, output cast to `out_dtype`.
    """
    N, H, W, Cin = x.shape
    Cout = w.shape[-1]
    if scale is not None:
        w = w * scale                             # fold BN scale into weights
    if Cin % 8:                                   # first layer: pad Cin 3 -> 8
        cpad = _round_up(Cin, 8) - Cin
        x = jnp.pad(x, ((0, 0), (0, 0), (0, 0), (0, cpad)))
        w = jnp.pad(w, ((0, 0), (0, 0), (0, cpad), (0, 0)))
        Cin += cpad
    # Per-ky weights with the 3 kx taps concatenated along the output axis.
    w3 = jnp.transpose(w, (0, 2, 1, 3)).reshape(3, Cin, 3 * Cout).astype(jnp.bfloat16)
    b = bias.reshape(1, Cout).astype(jnp.float32)
    merge_kx = 3 * Cout <= 256

    Hp = H + 2
    Wp = _round_up(W + 2, 16)   # multiple of 16 keeps bf16 slab loads tile-aligned
    TI = 128                    # sub-tile (f32 accumulator stays <= 16 vregs)
    M_valid = N * Hp * Wp
    grid = _cdiv(M_valid, 1024)                   # TM <= 1024, overhead-amortized
    TM = _round_up(_cdiv(M_valid, grid), TI)
    grid = _cdiv(M_valid, TM)
    n_inner = TM // TI
    M_out = grid * TM
    M_in = M_out + 2 * Wp + 8   # exactly covers the largest shifted slab read

    # Zero-pad spatially (conv padding) + flatten rows; batch folded into M.
    # bf16 storage halves HBM traffic and the VMEM-resident input.
    xp = jnp.pad(x.astype(jnp.bfloat16), ((0, 0), (1, 1), (1, Wp - W - 1), (0, 0)))
    xf = xp.reshape(N * Hp * Wp, Cin)
    xf = jnp.pad(xf, ((0, M_in - M_valid), (0, 0)))

    out_size = jnp.dtype(out_dtype).itemsize
    lane = lambda c: _round_up(c, 128)
    flops = 2 * M_out * 9 * Cin * Cout
    bytes_accessed = (M_in * Cin * 2 + 3 * Cin * 3 * Cout * 2
                      + M_out * Cout * out_size + Cout * 4)
    # Explicit VMEM budget (double-buffered input/weights/output + margin);
    # never below 32 MiB so we only ever raise the scoped limit.
    vmem_bytes = (2 * M_in * lane(Cin) * 2
                  + 2 * 3 * _round_up(Cin, 16) * lane(3 * Cout) * 2
                  + 2 * TM * lane(Cout) * out_size + (1 << 20))
    vmem_limit = min(112 << 20, max(32 << 20, vmem_bytes + (8 << 20)))

    out = pl.pallas_call(
        functools.partial(_conv3x3_kernel, wp=Wp, ti=TI, n_inner=n_inner,
                          relu=relu, merge_kx=merge_kx),
        out_shape=jax.ShapeDtypeStruct((M_out, Cout), out_dtype),
        grid=(grid,),
        in_specs=[
            pl.BlockSpec((M_in, Cin), lambda t: (0, 0)),        # invariant input
            pl.BlockSpec((3, Cin, 3 * Cout), lambda t: (0, 0, 0)),
            pl.BlockSpec((1, Cout), lambda t: (0, 0)),
        ],
        out_specs=pl.BlockSpec((TM, Cout), lambda t: (t, 0)),
        compiler_params=pltpu.CompilerParams(
            dimension_semantics=("parallel",),
            vmem_limit_bytes=vmem_limit),
        cost_estimate=pl.CostEstimate(flops=flops, transcendentals=0,
                                      bytes_accessed=bytes_accessed),
    )(xf, w3, b)

    # Crop the junk pad columns/rows back to the true spatial output.
    return out[:M_valid].reshape(N, Hp, Wp, Cout)[:, :H, :W, :]


# ------------------------------ parameter setup -------------------------------
def _init_conv(key, cin, cout):
    kw, kb = jax.random.split(key)
    return {"w": 0.1 * jax.random.normal(kw, (3, 3, cin, cout), jnp.float32),
            "b": 0.1 * jax.random.normal(kb, (cout,), jnp.float32)}


def _init_bn(key, c):
    k1, k2, k3, k4 = jax.random.split(key, 4)
    return {"gamma": 1.0 + 0.1 * jax.random.normal(k1, (c,), jnp.float32),
            "beta": 0.1 * jax.random.normal(k2, (c,), jnp.float32),
            "mean": 0.1 * jax.random.normal(k3, (c,), jnp.float32),
            "var": 1.0 + 0.1 * jnp.abs(jax.random.normal(k4, (c,), jnp.float32))}


def _init_down_blk(key, cin, cout):
    keys = jax.random.split(key, 4)
    layers, c = [], cin
    for j in range(2):
        layers.append({"conv": _init_conv(keys[2 * j], c, cout),
                       "bn": _init_bn(keys[2 * j + 1], cout)})
        c = cout
    return layers


def init_tiny_ssd(key):
    keys = iter(jax.random.split(key, 32))
    blocks = []
    # block_0: base_net = 3 down-sample blocks (3->16, 16->32, 32->64)
    base, cin = [], 3
    for cout in (16, 32, 64):
        base.append(_init_down_blk(next(keys), cin, cout))
        cin = cout
    blocks.append(("base", base))
    # block_1..3: down_sample_blk(128)
    cin = 64
    for _ in range(3):
        blocks.append(("down", _init_down_blk(next(keys), cin, 128)))
        cin = 128
    # block_4: AdaptiveMaxPool2d((1,1)) -- no params
    blocks.append(("pool", None))

    feat_c = [64, 128, 128, 128, 128]
    cls = [_init_conv(next(keys), c, NUM_ANCHORS * (NUM_CLASS + 1)) for c in feat_c]
    bbox = [_init_conv(next(keys), c, NUM_ANCHORS * 4) for c in feat_c]
    return {"blocks": blocks, "cls": cls, "bbox": bbox}


# ------------------------------- model pieces ---------------------------------
def _apply_down_blk(x, layers):
    for lyr in layers:
        bn = lyr["bn"]
        s = bn["gamma"] / jnp.sqrt(bn["var"] + BN_EPS)
        b = bn["beta"] - bn["mean"] * s + lyr["conv"]["b"] * s
        x = conv3x3(x, lyr["conv"]["w"], b, scale=s, relu=True)
    # MaxPool2d(2) -- cheap JAX glue (conv hot path above is in Pallas)
    N, H, W, C = x.shape
    return x.reshape(N, H // 2, 2, W // 2, 2, C).max(axis=(2, 4))


def _apply_block(kind, p, x):
    if kind == "base":
        for blk in p:
            x = _apply_down_blk(x, blk)
        return x
    if kind == "down":
        return _apply_down_blk(x, p)
    # AdaptiveMaxPool2d((1,1)) == global max over spatial dims
    return x.max(axis=(1, 2), keepdims=True)


def multibox_prior(in_height, in_width, sizes, ratios):
    """d2l-style anchor generation; returns (1, H*W*bpp, 4) normalized boxes."""
    size_t = jnp.asarray(sizes, jnp.float32)
    ratio_t = jnp.asarray(ratios, jnp.float32)
    bpp = len(sizes) + len(ratios) - 1
    steps_h, steps_w = 1.0 / in_height, 1.0 / in_width
    center_h = (jnp.arange(in_height, dtype=jnp.float32) + 0.5) * steps_h
    center_w = (jnp.arange(in_width, dtype=jnp.float32) + 0.5) * steps_w
    shift_y, shift_x = jnp.meshgrid(center_h, center_w, indexing="ij")
    shift_y, shift_x = shift_y.reshape(-1), shift_x.reshape(-1)

    ws = jnp.concatenate([size_t * jnp.sqrt(ratio_t[0]),
                          sizes[0] * jnp.sqrt(ratio_t[1:])]) * in_height / in_width
    hs = jnp.concatenate([size_t / jnp.sqrt(ratio_t[0]),
                          sizes[0] / jnp.sqrt(ratio_t[1:])])
    manip = jnp.tile(jnp.stack([-ws, -hs, ws, hs]).T / 2.0, (in_height * in_width, 1))
    grid = jnp.repeat(jnp.stack([shift_x, shift_y, shift_x, shift_y], axis=1), bpp, axis=0)
    return (grid + manip)[None]


def tiny_ssd_forward(params, x_nchw):
    x = jnp.transpose(x_nchw, (0, 2, 3, 1)).astype(jnp.float32)  # NCHW -> NHWC
    anchors, cls_list, bbox_list = [], [], []
    for i in range(5):
        kind, p = params["blocks"][i]
        x = _apply_block(kind, p, x)
        h, w = x.shape[1], x.shape[2]
        anchors.append(multibox_prior(h, w, SIZES[i], RATIOS[i]))
        cp, bp = params["cls"][i], params["bbox"][i]
        # Fused cls+bbox head: single conv with Cout = 8 + 16 = 24, split after.
        w_head = jnp.concatenate([cp["w"], bp["w"]], axis=-1)
        b_head = jnp.concatenate([cp["b"], bp["b"]], axis=0)
        head = conv3x3(x, w_head, b_head, scale=None, relu=False,
                       out_dtype=jnp.float32)
        n_cls = cp["w"].shape[-1]
        cls_list.append(head[..., :n_cls])
        bbox_list.append(head[..., n_cls:])

    anchors = jnp.concatenate(anchors, axis=1)
    # flatten_pred: NHWC reshape(N, -1) == permute(0,2,3,1)+flatten of NCHW
    cls_preds = jnp.concatenate([c.reshape(c.shape[0], -1) for c in cls_list], axis=1)
    cls_preds = cls_preds.reshape(cls_preds.shape[0], -1, NUM_CLASS + 1)
    bbox_preds = jnp.concatenate([b.reshape(b.shape[0], -1) for b in bbox_list], axis=1)
    return anchors, cls_preds, bbox_preds


# ------------------------------ self-check vs lax ------------------------------
def _self_check():
    """Pallas conv vs lax.conv with identically bf16-cast operands (f32 acc)."""
    k = jax.random.PRNGKey(1)
    for cin, cout, hw in ((16, 32, 8), (128, 128, 8)):   # merged + unmerged paths
        k, k1, k2, k3 = jax.random.split(k, 4)
        x = jax.random.normal(k1, (2, hw, hw, cin), jnp.float32)
        w = 0.1 * jax.random.normal(k2, (3, 3, cin, cout), jnp.float32)
        b = 0.1 * jax.random.normal(k3, (cout,), jnp.float32)
        got = conv3x3(x, w, b, relu=False, out_dtype=jnp.float32)
        xr = x.astype(jnp.bfloat16).astype(jnp.float32)
        wr = w.astype(jnp.bfloat16).astype(jnp.float32)
        ref = lax.conv_general_dilated(
            xr, wr, window_strides=(1, 1), padding="SAME",
            dimension_numbers=("NHWC", "HWIO", "NHWC"),
            precision=lax.Precision.HIGHEST) + b
        err = float(jnp.max(jnp.abs(got - ref)))
        assert err < 5e-2, f"conv3x3 mismatch (cin={cin}, cout={cout}): {err}"


# ----------------------------------- main --------------------------------------
if __name__ == "__main__":
    _self_check()

    key = jax.random.PRNGKey(0)
    kp, kx = jax.random.split(key)
    params = init_tiny_ssd(kp)

    # Smallest spatial size that survives the 5 stride-2 stages (64 -> 8,4,2,1,1).
    x = jax.random.normal(kx, (2, 3, 64, 64), jnp.float32)

    fwd = jax.jit(lambda inp: tiny_ssd_forward(params, inp))
    anchors, cls_preds, bbox_preds = fwd(x)
    jax.block_until_ready((anchors, cls_preds, bbox_preds))

    total = NUM_ANCHORS * (8 * 8 + 4 * 4 + 2 * 2 + 1 + 1)  # 344
    assert anchors.shape == (1, total, 4), anchors.shape
    assert cls_preds.shape == (2, total, NUM_CLASS + 1), cls_preds.shape
    assert bbox_preds.shape == (2, total * 4), bbox_preds.shape
    assert bool(jnp.isfinite(cls_preds).all()) and bool(jnp.isfinite(bbox_preds).all())
    print("KERNEL_OK")
</pallas_src>

<mosaic_0001>
module attributes {stable_mosaic.version = 11 : i64} {
  func.func @_conv3x3_kernel(%arg0: i32, %arg1: memref<424x16xbf16, #tpu.memory_space<vmem>>, %arg2: memref<3x16x96xbf16, #tpu.memory_space<vmem>>, %arg3: memref<1x32xf32, #tpu.memory_space<vmem>>, %arg4: memref<384x32xf32, #tpu.memory_space<vmem>>) attributes {dimension_semantics = [#tpu.dimension_semantics<parallel>], iteration_bounds = array<i64: 1>, scalar_prefetch = 0 : i64, scratch_operands = 0 : i64, tpu.core_type = #tpu.core_type<tc>, window_params = [{pipeline_mode = #tpu.pipeline_mode<synchronous>, transform_indices = @transform_0, window_bounds = array<i64: 424, 16>}, {pipeline_mode = #tpu.pipeline_mode<synchronous>, transform_indices = @transform_1, window_bounds = array<i64: 3, 16, 96>}, {pipeline_mode = #tpu.pipeline_mode<synchronous>, transform_indices = @transform_2, window_bounds = array<i64: 1, 32>}, {transform_indices = @transform_3, window_bounds = array<i64: 384, 32>}]} {
    %c384_i32 = arith.constant 384 : i32
    %0 = arith.muli %arg0, %c384_i32 : i32
    %c0 = arith.constant 0 : index
    %c0_0 = arith.constant 0 : index
    %1 = vector.load %arg3[%c0, %c0_0] : memref<1x32xf32, #tpu.memory_space<vmem>>, vector<1x32xf32>
    %c0_i32 = arith.constant 0 : i32
    %c3_i32 = arith.constant 3 : i32
    %2 = arith.addi %c0_i32, %c3_i32 : i32
    %c1_i32 = arith.constant 1 : i32
    scf.for %arg5 = %c0_i32 to %2 step %c1_i32  : i32 {
      %c128_i32 = arith.constant 128 : i32
      %3 = arith.muli %arg5, %c128_i32 : i32
      %4 = tpu.assume_multiple %3, 128 : i32
      %5 = arith.addi %0, %4 : i32
      %cst = arith.constant 0.000000e+00 : f32
      %6 = vector.broadcast %cst : f32 to vector<128x32xf32>
      %c0_i32_2 = arith.constant 0 : i32
      %7 = arith.addi %5, %c0_i32_2 : i32
      %8 = tpu.assume_multiple %7, 16 : i32
      %9 = arith.index_cast %8 : i32 to index
      %c0_3 = arith.constant 0 : index
      %10 = vector.load %arg1[%9, %c0_3] : memref<424x16xbf16, #tpu.memory_space<vmem>>, vector<136x16xbf16>
      %c0_4 = arith.constant 0 : index
      %c0_5 = arith.constant 0 : index
      %c0_6 = arith.constant 0 : index
      %11 = vector.load %arg2[%c0_4, %c0_5, %c0_6] : memref<3x16x96xbf16, #tpu.memory_space<vmem>>, vector<1x16x96xbf16>
      %12 = vector.shape_cast %11 : vector<1x16x96xbf16> to vector<16x96xbf16>
      %cst_7 = arith.constant dense<0.000000e+00> : vector<136x96xf32>
      %13 = tpu.matmul %10, %12, %cst_7 {dimension_numbers = #tpu.dot_dimension_numbers<[1], [0], [0], [1], [0, 0, 1, 1], [], []>} : vector<136x16xbf16>, vector<16x96xbf16>, vector<136x96xf32> -> vector<136x96xf32>
      %14 = vector.extract_strided_slice %13 {offsets = [0, 0], sizes = [128, 32], strides = [1, 1]} : vector<136x96xf32> to vector<128x32xf32>
      %15 = arith.addf %6, %14 : vector<128x32xf32>
      %16 = vector.extract_strided_slice %13 {offsets = [1, 32], sizes = [128, 32], strides = [1, 1]} : vector<136x96xf32> to vector<128x32xf32>
      %17 = arith.addf %15, %16 : vector<128x32xf32>
      %18 = vector.extract_strided_slice %13 {offsets = [2, 64], sizes = [128, 32], strides = [1, 1]} : vector<136x96xf32> to vector<128x32xf32>
      %19 = arith.addf %17, %18 : vector<128x32xf32>
      %c16_i32 = arith.constant 16 : i32
      %20 = arith.addi %5, %c16_i32 : i32
      %21 = tpu.assume_multiple %20, 16 : i32
      %22 = arith.index_cast %21 : i32 to index
      %c0_8 = arith.constant 0 : index
      %23 = vector.load %arg1[%22, %c0_8] : memref<424x16xbf16, #tpu.memory_space<vmem>>, vector<136x16xbf16>
      %c1 = arith.constant 1 : index
      %c0_9 = arith.constant 0 : index
      %c0_10 = arith.constant 0 : index
      %24 = vector.load %arg2[%c1, %c0_9, %c0_10] : memref<3x16x96xbf16, #tpu.memory_space<vmem>>, vector<1x16x96xbf16>
      %25 = vector.shape_cast %24 : vector<1x16x96xbf16> to vector<16x96xbf16>
      %cst_11 = arith.constant dense<0.000000e+00> : vector<136x96xf32>
      %26 = tpu.matmul %23, %25, %cst_11 {dimension_numbers = #tpu.dot_dimension_numbers<[1], [0], [0], [1], [0, 0, 1, 1], [], []>} : vector<136x16xbf16>, vector<16x96xbf16>, vector<136x96xf32> -> vector<136x96xf32>
      %27 = vector.extract_strided_slice %26 {offsets = [0, 0], sizes = [128, 32], strides = [1, 1]} : vector<136x96xf32> to vector<128x32xf32>
      %28 = arith.addf %19, %27 : vector<128x32xf32>
      %29 = vector.extract_strided_slice %26 {offsets = [1, 32], sizes = [128, 32], strides = [1, 1]} : vector<136x96xf32> to vector<128x32xf32>
      %30 = arith.addf %28, %29 : vector<128x32xf32>
      %31 = vector.extract_strided_slice %26 {offsets = [2, 64], sizes = [128, 32], strides = [1, 1]} : vector<136x96xf32> to vector<128x32xf32>
      %32 = arith.addf %30, %31 : vector<128x32xf32>
      %c32_i32 = arith.constant 32 : i32
      %33 = arith.addi %5, %c32_i32 : i32
      %34 = tpu.assume_multiple %33, 16 : i32
      %35 = arith.index_cast %34 : i32 to index
      %c0_12 = arith.constant 0 : index
      %36 = vector.load %arg1[%35, %c0_12] : memref<424x16xbf16, #tpu.memory_space<vmem>>, vector<136x16xbf16>
      %c2 = arith.constant 2 : index
      %c0_13 = arith.constant 0 : index
      %c0_14 = arith.constant 0 : index
      %37 = vector.load %arg2[%c2, %c0_13, %c0_14] : memref<3x16x96xbf16, #tpu.memory_space<vmem>>, vector<1x16x96xbf16>
      %38 = vector.shape_cast %37 : vector<1x16x96xbf16> to vector<16x96xbf16>
      %cst_15 = arith.constant dense<0.000000e+00> : vector<136x96xf32>
      %39 = tpu.matmul %36, %38, %cst_15 {dimension_numbers = #tpu.dot_dimension_numbers<[1], [0], [0], [1], [0, 0, 1, 1], [], []>} : vector<136x16xbf16>, vector<16x96xbf16>, vector<136x96xf32> -> vector<136x96xf32>
      %40 = vector.extract_strided_slice %39 {offsets = [0, 0], sizes = [128, 32], strides = [1, 1]} : vector<136x96xf32> to vector<128x32xf32>
      %41 = arith.addf %32, %40 : vector<128x32xf32>
      %42 = vector.extract_strided_slice %39 {offsets = [1, 32], sizes = [128, 32], strides = [1, 1]} : vector<136x96xf32> to vector<128x32xf32>
      %43 = arith.addf %41, %42 : vector<128x32xf32>
      %44 = vector.extract_strided_slice %39 {offsets = [2, 64], sizes = [128, 32], strides = [1, 1]} : vector<136x96xf32> to vector<128x32xf32>
      %45 = arith.addf %43, %44 : vector<128x32xf32>
      %46 = vector.broadcast %1 : vector<1x32xf32> to vector<128x32xf32>
      %47 = arith.addf %45, %46 : vector<128x32xf32>
      %48 = arith.index_cast %4 : i32 to index
      %c0_16 = arith.constant 0 : index
      %49 = vector.load %arg4[%48, %c0_16] : memref<384x32xf32, #tpu.memory_space<vmem>>, vector<128x32xf32>
      tpu.vector_store %arg4[%48, %c0_16], %47 {strides = array<i32>} : memref<384x32xf32, #tpu.memory_space<vmem>>, vector<128x32xf32>,
    }
    %c3_i32_1 = arith.constant 3 : i32
    return
  }
  func.func @transform_0(%arg0: i32) -> (i32, i32) {
    %c0_i32 = arith.constant 0 : i32
    %c0_i32_0 = arith.constant 0 : i32
    %c0_i32_1 = arith.constant 0 : i32
    return %c0_i32, %c0_i32_0 : i32, i32
  }
  func.func @transform_1(%arg0: i32) -> (i32, i32, i32) {
    %c0_i32 = arith.constant 0 : i32
    %c0_i32_0 = arith.constant 0 : i32
    %c0_i32_1 = arith.constant 0 : i32
    %c0_i32_2 = arith.constant 0 : i32
    return %c0_i32, %c0_i32_0, %c0_i32_1 : i32, i32, i32
  }
  func.func @transform_2(%arg0: i32) -> (i32, i32) {
    %c0_i32 = arith.constant 0 : i32
    %c0_i32_0 = arith.constant 0 : i32
    %c0_i32_1 = arith.constant 0 : i32
    return %c0_i32, %c0_i32_0 : i32, i32
  }
  func.func @transform_3(%arg0: i32) -> (i32, i32) {
    %c0_i32 = arith.constant 0 : i32
    %c0_i32_0 = arith.constant 0 : i32
    return %arg0, %c0_i32 : i32, i32
  }
}

</mosaic_0001>

<llo_original>
// kernel: tpu_custom_call.1
$region0: #{tpu_custom_call.1}
  #allocation0 [shape = 'u32[]', space=smem, size = 0x4, offset = 0x4, fixed_abs, tag = 'smem constant byte address 0x4 - core index']
  #allocation1 [shape = 'u32[144,128]{1,0:T(1,128)}', space=vmem, size = 0x12000, scoped, tag = 'internal scratch']
  %s0 = inlined_call_operand.vmem [shape: bf16[424,16], index: 0, kind: input, shape index: {}]
  %s1 = inlined_call_operand.vmem [shape: bf16[3,16,96], index: 1, kind: input, shape index: {}]
  %s2 = inlined_call_operand.vmem [shape: f32[1,32], index: 2, kind: input, shape index: {}]
  %s3 = inlined_call_operand.vmem [shape: f32[384,32], index: 3, kind: output, shape index: {}]
  %s4 = sld [smem:[#allocation0]]
  $region29: #{tpu_custom_call.1} parent=0
    _
  %s6 = ssub.s32 1, %s4
  %s7 = scalar_select 0, %s6, %s4
  // Predicated region
  $region2: #{tpu_custom_call.1} parent=0 // pred_check
    _
  $region3: #{tpu_custom_call.1} parent=0 // pred_check_branch
    %9 = sbr.rel (0) target = $region5
  $region4: #{tpu_custom_call.1} parent=0 // pred_region
    _
  $region5: #{tpu_custom_call.1} parent=0 // pred_fallthru
    _
  // Predicated region
  $region6: #{tpu_custom_call.1} parent=0 // pred_check
    _
  $region7: #{tpu_custom_call.1} parent=0 // pred_check_branch
    %11 = sbr.rel (0) target = $region9
  $region8: #{tpu_custom_call.1} parent=0 // pred_region
    _
  $region9: #{tpu_custom_call.1} parent=0 // pred_fallthru
    _
  // Predicated region
  $region10: #{tpu_custom_call.1} parent=0 // pred_check
    _
  $region11: #{tpu_custom_call.1} parent=0 // pred_check_branch
    %13 = sbr.rel (0) target = $region13
  $region12: #{tpu_custom_call.1} parent=0 // pred_region
    _
  $region13: #{tpu_custom_call.1} parent=0 // pred_fallthru
    _
  %s15 = smul.u32 0, 384
  %v16 = vld [vmem:[%s2] sm:$0x1]
  loop: start=0, step=1, limit=3
  $region14: #{tpu_custom_call.1} parent=0 // loop_pre_header
    _
  $region15: #{tpu_custom_call.1} parent=0 // loop_header
    %s18 = sphi 0, %s22
    %p19 = scmp.ge.s32.totalorder %s18, 3
  $region16: #{tpu_custom_call.1} parent=0 // loop_header_branch
    %21 = sbr.rel (%p19) target = $region20
  $region17: #{tpu_custom_call.1} parent=0 // loop_body
    %s23 = smul.u32 %s18, 128
    %s24 = sadd.s32 %s15, %s23
    %s25 = sshra.s32 %s24, 3
    %s26 = sand.u32 %s24, 7
    %s27 = smul.addr %s25, 4
    %s28 = scalar_lea.vmem %s0, %s27
    %v29 = vld [vmem:[%s28] sm:$0xf]
    %v30 = vld [vmem:[%s28 + $0x4] sm:$0xf]
    %v31 = vld [vmem:[%s28 + $0x8] sm:$0xf]
    %v32 = vld [vmem:[%s28 + $0xc] sm:$0xf]
    %v33 = vld [vmem:[%s28 + $0x10] sm:$0xf]
    %v34 = vld [vmem:[%s28 + $0x14] sm:$0xf]
    %v35 = vld [vmem:[%s28 + $0x18] sm:$0xf]
    %v36 = vld [vmem:[%s28 + $0x1c] sm:$0xf]
    %v37 = vld [vmem:[%s28 + $0x20] sm:$0xf]
    %v38 = vld [vmem:[%s28 + $0x24] sm:$0xf]
    %v39 = vld [vmem:[%s28 + $0x28] sm:$0xf]
    %v40 = vld [vmem:[%s28 + $0x2c] sm:$0xf]
    %v41 = vld [vmem:[%s28 + $0x30] sm:$0xf]
    %v42 = vld [vmem:[%s28 + $0x34] sm:$0xf]
    %v43 = vld [vmem:[%s28 + $0x38] sm:$0xf]
    %v44 = vld [vmem:[%s28 + $0x3c] sm:$0xf]
    %v45 = vld [vmem:[%s28 + $0x40] sm:$0xf]
    %v46 = vld [vmem:[%s1] sm:$0xf]
    %v47 = vld [vmem:[%s1 + $0x4] sm:$0xf]
    %v65 = vunpack.c.l.b16 %v29
    %v66 = vunpack.c.l.b16 %v30
    %v67 = vunpack.c.l.b16 %v31
    %v68 = vunpack.c.l.b16 %v32
    %v69 = vunpack.c.l.b16 %v33
    %v70 = vunpack.c.l.b16 %v34
    %v71 = vunpack.c.l.b16 %v35
    %v72 = vunpack.c.l.b16 %v36
    %v73 = vunpack.c.l.b16 %v37
    %v74 = vunpack.c.l.b16 %v38
    %v75 = vunpack.c.l.b16 %v39
    %v76 = vunpack.c.l.b16 %v40
    %v77 = vunpack.c.l.b16 %v41
    %v78 = vunpack.c.l.b16 %v42
    %v79 = vunpack.c.l.b16 %v43
    %v80 = vunpack.c.l.b16 %v44
    %v81 = vunpack.c.l.b16 %v45
    %v82 = vpack.c.b16 %v66, %v65
    %v83 = vpack.c.b16 %v68, %v67
    %v84 = vpack.c.b16 %v70, %v69
    %v85 = vpack.c.b16 %v72, %v71
    %v86 = vpack.c.b16 %v74, %v73
    %v87 = vpack.c.b16 %v76, %v75
    %v88 = vpack.c.b16 %v78, %v77
    %v89 = vpack.c.b16 %v80, %v79
    %v90 = vpack.c.b16 %v81, %v81
    %v93 = vunpack.c.l.b16 %v46
    %v94 = vunpack.c.l.b16 %v47
    %v95 = vpack.c.b16 %v94, %v93
    %vm97 = vcmask 130048
    %v99 = vsel %vm97, %v82, 0
    %v102 = vsel %vm97, %v83, 0
    %v105 = vsel %vm97, %v84, 0
    %v108 = vsel %vm97, %v85, 0
    %v111 = vsel %vm97, %v86, 0
    %v114 = vsel %vm97, %v87, 0
    %v117 = vsel %vm97, %v88, 0
    %v120 = vsel %vm97, %v89, 0
    %v123 = vsel %vm97, %v90, 0
    %125 = vmatprep.subr.bf16.mxu0 0
    %126 = vmatpush1.bf16.msra.mxu0 %v95
    %127 = vmatprep.subr.bf16.mxu0 0
    %128 = vmatpush1.bf16.msra.mxu0 0
    %129 = vmatprep.subr.bf16.mxu0 0
    %130 = vmatpush1.bf16.msra.mxu0 0
    %131 = vmatprep.subr.bf16.mxu0 0
    %132 = vmatpush1.bf16.msra.mxu0 0
    %133 = vmatprep.subr.bf16.mxu0 0
    %134 = vmatpush1.bf16.msra.mxu0 0
    %135 = vmatprep.subr.bf16.mxu0 0
    %136 = vmatpush1.bf16.msra.mxu0 0
    %137 = vmatprep.subr.bf16.mxu0 0
    %138 = vmatpush1.bf16.msra.mxu0 0
    %139 = vmatprep.subr.bf16.mxu0 0
    %140 = vmatpush1.bf16.msra.mxu0 0
    %141 = vmatprep.subr.bf16.mxu0 0
    %142 = vmatpush1.bf16.msra.mxu0 0
    %143 = vmatprep.subr.bf16.mxu0 0
    %144 = vmatpush1.bf16.msra.mxu0 0
    %145 = vmatprep.subr.bf16.mxu0 0
    %146 = vmatpush1.bf16.msra.mxu0 0
    %147 = vmatprep.subr.bf16.mxu0 0
    %148 = vmatpush1.bf16.msra.mxu0 0
    %149 = vmatprep.subr.bf16.mxu0 0
    %150 = vmatpush1.bf16.msra.mxu0 0
    %151 = vmatprep.subr.bf16.mxu0 0
    %152 = vmatpush1.bf16.msra.mxu0 0
    %153 = vmatprep.subr.bf16.mxu0 0
    %154 = vmatpush1.bf16.msra.mxu0 0
    %155 = vmatprep.subr.bf16.mxu0 0
    %156 = vmatpush1.bf16.msra.mxu0 0
    %157 = vmatprep.mubr.bf16.mxu0 0
    %158 = vmatmul.mubr.bf16.gmra.mrb[0].mxu0 %v99
    %v159 = vpop.f32.mrb[0].mxu0
    %v160 = vadd.f32 0.0, %v159
    %v161 = vpop.f32.mrb[0].mxu0
    %v162 = vpop.f32.mrb[0].mxu0
    %v163 = vadd.f32 0.0, %v162
    %v164 = vpop.f32.mrb[0].mxu0
    %165 = vmatprep.mubr.bf16.mxu0 0
    %166 = vmatmul.mubr.bf16.gmra.mrb[0].mxu0 %v102
    %v167 = vpop.f32.mrb[0].mxu0
    %v168 = vadd.f32 0.0, %v167
    %v169 = vpop.f32.mrb[0].mxu0
    %v170 = vpop.f32.mrb[0].mxu0
    %v171 = vadd.f32 0.0, %v170
    %v172 = vpop.f32.mrb[0].mxu0
    %173 = vmatprep.mubr.bf16.mxu0 0
    %174 = vmatmul.mubr.bf16.gmra.mrb[0].mxu0 %v105
    %v175 = vpop.f32.mrb[0].mxu0
    %v176 = vadd.f32 0.0, %v175
    %v177 = vpop.f32.mrb[0].mxu0
    %v178 = vpop.f32.mrb[0].mxu0
    %v179 = vadd.f32 0.0, %v178
    %v180 = vpop.f32.mrb[0].mxu0
    %181 = vmatprep.mubr.bf16.mxu0 0
    %182 = vmatmul.mubr.bf16.gmra.mrb[0].mxu0 %v108
    %v183 = vpop.f32.mrb[0].mxu0
    %v184 = vadd.f32 0.0, %v183
    %v185 = vpop.f32.mrb[0].mxu0
    %v186 = vpop.f32.mrb[0].mxu0
    %v187 = vadd.f32 0.0, %v186
    %v188 = vpop.f32.mrb[0].mxu0
    %189 = vmatprep.mubr.bf16.mxu0 0
    %190 = vmatmul.mubr.bf16.gmra.mrb[0].mxu0 %v111
    %v191 = vpop.f32.mrb[0].mxu0
    %v192 = vadd.f32 0.0, %v191
    %v193 = vpop.f32.mrb[0].mxu0
    %v194 = vpop.f32.mrb[0].mxu0
    %v195 = vadd.f32 0.0, %v194
    %v196 = vpop.f32.mrb[0].mxu0
    %197 = vmatprep.mubr.bf16.mxu0 0
    %198 = vmatmul.mubr.bf16.gmra.mrb[0].mxu0 %v114
    %v199 = vpop.f32.mrb[0].mxu0
    %v200 = vadd.f32 0.0, %v199
    %v201 = vpop.f32.mrb[0].mxu0
    %v202 = vpop.f32.mrb[0].mxu0
    %v203 = vadd.f32 0.0, %v202
    %v204 = vpop.f32.mrb[0].mxu0
    %205 = vmatprep.mubr.bf16.mxu0 0
    %206 = vmatmul.mubr.bf16.gmra.mrb[0].mxu0 %v117
    %v207 = vpop.f32.mrb[0].mxu0
    %v208 = vadd.f32 0.0, %v207
    %v209 = vpop.f32.mrb[0].mxu0
    %v210 = vpop.f32.mrb[0].mxu0
    %v211 = vadd.f32 0.0, %v210
    %v212 = vpop.f32.mrb[0].mxu0
    %213 = vmatprep.mubr.bf16.mxu0 0
    %214 = vmatmul.mubr.bf16.gmra.mrb[0].mxu0 %v120
    %v215 = vpop.f32.mrb[0].mxu0
    %v216 = vadd.f32 0.0, %v215
    %v217 = vpop.f32.mrb[0].mxu0
    %v218 = vpop.f32.mrb[0].mxu0
    %v219 = vadd.f32 0.0, %v218
    %v220 = vpop.f32.mrb[0].mxu0
    %221 = vmatprep.mubr.bf16.mxu0 0
    %222 = vmatmul.mubr.bf16.gmra.mrb[0].mxu0 %v123
    %v223 = vpop.f32.mrb[0].mxu0
    %v224 = vadd.f32 0.0, %v223
    %v225 = vpop.f32.mrb[0].mxu0
    %v226 = vpop.f32.mrb[0].mxu0
    %v227 = vpop.f32.mrb[0].mxu0
    %228 = vdwg.mxu0
    %v229 = vadd.f32 %v160, 0.0
    %v230 = vadd.f32 %v163, 0.0
    %v231 = vadd.f32 %v168, 0.0
    %v232 = vadd.f32 %v171, 0.0
    %v233 = vadd.f32 %v176, 0.0
    %v234 = vadd.f32 %v179, 0.0
    %v235 = vadd.f32 %v184, 0.0
    %v236 = vadd.f32 %v187, 0.0
    %v237 = vadd.f32 %v192, 0.0
    %v238 = vadd.f32 %v195, 0.0
    %v239 = vadd.f32 %v200, 0.0
    %v240 = vadd.f32 %v203, 0.0
    %v241 = vadd.f32 %v208, 0.0
    %v242 = vadd.f32 %v211, 0.0
    %v243 = vadd.f32 %v216, 0.0
    %v244 = vadd.f32 %v219, 0.0
    %vm262 = vcmask 1046528
    %v263 = vrot.slane %v160, 1
    %v264 = vrot.slane %v163, 1
    %v265 = vsel %vm262, %v263, %v264
    %v266 = vrot.slane %v168, 1
    %v267 = vsel %vm262, %v264, %v266
    %v268 = vrot.slane %v171, 1
    %v269 = vsel %vm262, %v266, %v268
    %v270 = vrot.slane %v176, 1
    %v271 = vsel %vm262, %v268, %v270
    %v272 = vrot.slane %v179, 1
    %v273 = vsel %vm262, %v270, %v272
    %v274 = vrot.slane %v184, 1
    %v275 = vsel %vm262, %v272, %v274
    %v276 = vrot.slane %v187, 1
    %v277 = vsel %vm262, %v274, %v276
    %v278 = vrot.slane %v192, 1
    %v279 = vsel %vm262, %v276, %v278
    %v280 = vrot.slane %v195, 1
    %v281 = vsel %vm262, %v278, %v280
    %v282 = vrot.slane %v200, 1
    %v283 = vsel %vm262, %v280, %v282
    %v284 = vrot.slane %v203, 1
    %v285 = vsel %vm262, %v282, %v284
    %v286 = vrot.slane %v208, 1
    %v287 = vsel %vm262, %v284, %v286
    %v288 = vrot.slane %v211, 1
    %v289 = vsel %vm262, %v286, %v288
    %v290 = vrot.slane %v216, 1
    %v291 = vsel %vm262, %v288, %v290
    %v292 = vrot.slane %v219, 1
    %v293 = vsel %vm262, %v290, %v292
    %v294 = vrot.slane %v224, 1
    %v295 = vsel %vm262, %v292, %v294
    %296 = vrot.lane.b32.xlu0 %v265, 96
    %v297 = vpop.permute.xlu0 %296
    %298 = vrot.lane.b32.xlu0 %v267, 96
    %v299 = vpop.permute.xlu0 %298
    %300 = vrot.lane.b32.xlu0 %v269, 96
    %v301 = vpop.permute.xlu0 %300
    %302 = vrot.lane.b32.xlu0 %v271, 96
    %v303 = vpop.permute.xlu0 %302
    %304 = vrot.lane.b32.xlu0 %v273, 96
    %v305 = vpop.permute.xlu0 %304
    %306 = vrot.lane.b32.xlu0 %v275, 96
    %v307 = vpop.permute.xlu0 %306
    %308 = vrot.lane.b32.xlu0 %v277, 96
    %v309 = vpop.permute.xlu0 %308
    %310 = vrot.lane.b32.xlu0 %v279, 96
    %v311 = vpop.permute.xlu0 %310
    %312 = vrot.lane.b32.xlu0 %v281, 96
    %v313 = vpop.permute.xlu0 %312
    %314 = vrot.lane.b32.xlu0 %v283, 96
    %v315 = vpop.permute.xlu0 %314
    %316 = vrot.lane.b32.xlu0 %v285, 96
    %v317 = vpop.permute.xlu0 %316
    %318 = vrot.lane.b32.xlu0 %v287, 96
    %v319 = vpop.permute.xlu0 %318
    %320 = vrot.lane.b32.xlu0 %v289, 96
    %v321 = vpop.permute.xlu0 %320
    %322 = vrot.lane.b32.xlu0 %v291, 96
    %v323 = vpop.permute.xlu0 %322
    %324 = vrot.lane.b32.xlu0 %v293, 96
    %v325 = vpop.permute.xlu0 %324
    %326 = vrot.lane.b32.xlu0 %v295, 96
    %v327 = vpop.permute.xlu0 %326
    %v344 = vadd.f32 %v229, %v297
    %v345 = vadd.f32 %v230, %v299
    %v346 = vadd.f32 %v231, %v301
    %v347 = vadd.f32 %v232, %v303
    %v348 = vadd.f32 %v233, %v305
    %v349 = vadd.f32 %v234, %v307
    %v350 = vadd.f32 %v235, %v309
    %v351 = vadd.f32 %v236, %v311
    %v352 = vadd.f32 %v237, %v313
    %v353 = vadd.f32 %v238, %v315
    %v354 = vadd.f32 %v239, %v317
    %v355 = vadd.f32 %v240, %v319
    %v356 = vadd.f32 %v241, %v321
    %v357 = vadd.f32 %v242, %v323
    %v358 = vadd.f32 %v243, %v325
    %v359 = vadd.f32 %v244, %v327
    %vm360 = vcmask 1045504
    %v361 = vrot.slane %v160, 2
    %v362 = vrot.slane %v163, 2
    %v363 = vsel %vm360, %v361, %v362
    %v364 = vrot.slane %v168, 2
    %v365 = vsel %vm360, %v362, %v364
    %v366 = vrot.slane %v171, 2
    %v367 = vsel %vm360, %v364, %v366
    %v368 = vrot.slane %v176, 2
    %v369 = vsel %vm360, %v366, %v368
    %v370 = vrot.slane %v179, 2
    %v371 = vsel %vm360, %v368, %v370
    %v372 = vrot.slane %v184, 2
    %v373 = vsel %vm360, %v370, %v372
    %v374 = vrot.slane %v187, 2
    %v375 = vsel %vm360, %v372, %v374
    %v376 = vrot.slane %v192, 2
    %v377 = vsel %vm360, %v374, %v376
    %v378 = vrot.slane %v195, 2
    %v379 = vsel %vm360, %v376, %v378
    %v380 = vrot.slane %v200, 2
    %v381 = vsel %vm360, %v378, %v380
    %v382 = vrot.slane %v203, 2
    %v383 = vsel %vm360, %v380, %v382
    %v384 = vrot.slane %v208, 2
    %v385 = vsel %vm360, %v382, %v384
    %v386 = vrot.slane %v211, 2
    %v387 = vsel %vm360, %v384, %v386
    %v388 = vrot.slane %v216, 2
    %v389 = vsel %vm360, %v386, %v388
    %v390 = vrot.slane %v219, 2
    %v391 = vsel %vm360, %v388, %v390
    %v392 = vrot.slane %v224, 2
    %v393 = vsel %vm360, %v390, %v392
    %394 = vrot.lane.b32.xlu0 %v363, 64
    %v395 = vpop.permute.xlu0 %394
    %396 = vrot.lane.b32.xlu0 %v365, 64
    %v397 = vpop.permute.xlu0 %396
    %398 = vrot.lane.b32.xlu0 %v367, 64
    %v399 = vpop.permute.xlu0 %398
    %400 = vrot.lane.b32.xlu0 %v369, 64
    %v401 = vpop.permute.xlu0 %400
    %402 = vrot.lane.b32.xlu0 %v371, 64
    %v403 = vpop.permute.xlu0 %402
    %404 = vrot.lane.b32.xlu0 %v373, 64
    %v405 = vpop.permute.xlu0 %404
    %406 = vrot.lane.b32.xlu0 %v375, 64
    %v407 = vpop.permute.xlu0 %406
    %408 = vrot.lane.b32.xlu0 %v377, 64
    %v409 = vpop.permute.xlu0 %408
    %410 = vrot.lane.b32.xlu0 %v379, 64
    %v411 = vpop.permute.xlu0 %410
    %412 = vrot.lane.b32.xlu0 %v381, 64
    %v413 = vpop.permute.xlu0 %412
    %414 = vrot.lane.b32.xlu0 %v383, 64
    %v415 = vpop.permute.xlu0 %414
    %416 = vrot.lane.b32.xlu0 %v385, 64
    %v417 = vpop.permute.xlu0 %416
    %418 = vrot.lane.b32.xlu0 %v387, 64
    %v419 = vpop.permute.xlu0 %418
    %420 = vrot.lane.b32.xlu0 %v389, 64
    %v421 = vpop.permute.xlu0 %420
    %422 = vrot.lane.b32.xlu0 %v391, 64
    %v423 = vpop.permute.xlu0 %422
    %424 = vrot.lane.b32.xlu0 %v393, 64
    %v425 = vpop.permute.xlu0 %424
    %v442 = vadd.f32 %v344, %v395
    %v443 = vadd.f32 %v345, %v397
    %v444 = vadd.f32 %v346, %v399
    %v445 = vadd.f32 %v347, %v401
    %v446 = vadd.f32 %v348, %v403
    %v447 = vadd.f32 %v349, %v405
    %v448 = vadd.f32 %v350, %v407
    %v449 = vadd.f32 %v351, %v409
    %v450 = vadd.f32 %v352, %v411
    %v451 = vadd.f32 %v353, %v413
    %v452 = vadd.f32 %v354, %v415
    %v453 = vadd.f32 %v355, %v417
    %v454 = vadd.f32 %v356, %v419
    %v455 = vadd.f32 %v357, %v421
    %v456 = vadd.f32 %v358, %v423
    %v457 = vadd.f32 %v359, %v425
    %s458 = sadd.s32 %s24, 16
    %s459 = sshra.s32 %s458, 3
    %s460 = sand.u32 %s458, 7
    %s461 = smul.addr %s459, 4
    %s462 = scalar_lea.vmem %s0, %s461
    %v463 = vld [vmem:[%s462] sm:$0xf]
    %v464 = vld [vmem:[%s462 + $0x4] sm:$0xf]
    %v465 = vld [vmem:[%s462 + $0x8] sm:$0xf]
    %v466 = vld [vmem:[%s462 + $0xc] sm:$0xf]
    %v467 = vld [vmem:[%s462 + $0x10] sm:$0xf]
    %v468 = vld [vmem:[%s462 + $0x14] sm:$0xf]
    %v469 = vld [vmem:[%s462 + $0x18] sm:$0xf]
    %v470 = vld [vmem:[%s462 + $0x1c] sm:$0xf]
    %v471 = vld [vmem:[%s462 + $0x20] sm:$0xf]
    %v472 = vld [vmem:[%s462 + $0x24] sm:$0xf]
    %v473 = vld [vmem:[%s462 + $0x28] sm:$0xf]
    %v474 = vld [vmem:[%s462 + $0x2c] sm:$0xf]
    %v475 = vld [vmem:[%s462 + $0x30] sm:$0xf]
    %v476 = vld [vmem:[%s462 + $0x34] sm:$0xf]
    %v477 = vld [vmem:[%s462 + $0x38] sm:$0xf]
    %v478 = vld [vmem:[%s462 + $0x3c] sm:$0xf]
    %v479 = vld [vmem:[%s462 + $0x40] sm:$0xf]
    %s480 = scalar_lea.vmem %s1, 8
    %v481 = vld [vmem:[%s480] sm:$0xf]
    %v482 = vld [vmem:[%s480 + $0x4] sm:$0xf]
    %v500 = vunpack.c.l.b16 %v463
    %v501 = vunpack.c.l.b16 %v464
    %v502 = vunpack.c.l.b16 %v465
    %v503 = vunpack.c.l.b16 %v466
    %v504 = vunpack.c.l.b16 %v467
    %v505 = vunpack.c.l.b16 %v468
    %v506 = vunpack.c.l.b16 %v469
    %v507 = vunpack.c.l.b16 %v470
    %v508 = vunpack.c.l.b16 %v471
    %v509 = vunpack.c.l.b16 %v472
    %v510 = vunpack.c.l.b16 %v473
    %v511 = vunpack.c.l.b16 %v474
    %v512 = vunpack.c.l.b16 %v475
    %v513 = vunpack.c.l.b16 %v476
    %v514 = vunpack.c.l.b16 %v477
    %v515 = vunpack.c.l.b16 %v478
    %v516 = vunpack.c.l.b16 %v479
    %v517 = vpack.c.b16 %v501, %v500
    %v518 = vpack.c.b16 %v503, %v502
    %v519 = vpack.c.b16 %v505, %v504
    %v520 = vpack.c.b16 %v507, %v506
    %v521 = vpack.c.b16 %v509, %v508
    %v522 = vpack.c.b16 %v511, %v510
    %v523 = vpack.c.b16 %v513, %v512
    %v524 = vpack.c.b16 %v515, %v514
    %v525 = vpack.c.b16 %v516, %v516
    %v528 = vunpack.c.l.b16 %v481
    %v529 = vunpack.c.l.b16 %v482
    %v530 = vpack.c.b16 %v529, %v528
    %v533 = vsel %vm97, %v517, 0
    %v536 = vsel %vm97, %v518, 0
    %v539 = vsel %vm97, %v519, 0
    %v542 = vsel %vm97, %v520, 0
    %v545 = vsel %vm97, %v521, 0
    %v548 = vsel %vm97, %v522, 0
    %v551 = vsel %vm97, %v523, 0
    %v554 = vsel %vm97, %v524, 0
    %v557 = vsel %vm97, %v525, 0
    %559 = vmatprep.subr.bf16.mxu0 0
    %560 = vmatpush1.bf16.msra.mxu0 %v530
    %561 = vmatprep.subr.bf16.mxu0 0
    %562 = vmatpush1.bf16.msra.mxu0 0
    %563 = vmatprep.subr.bf16.mxu0 0
    %564 = vmatpush1.bf16.msra.mxu0 0
    %565 = vmatprep.subr.bf16.mxu0 0
    %566 = vmatpush1.bf16.msra.mxu0 0
    %567 = vmatprep.subr.bf16.mxu0 0
    %568 = vmatpush1.bf16.msra.mxu0 0
    %569 = vmatprep.subr.bf16.mxu0 0
    %570 = vmatpush1.bf16.msra.mxu0 0
    %571 = vmatprep.subr.bf16.mxu0 0
    %572 = vmatpush1.bf16.msra.mxu0 0
    %573 = vmatprep.subr.bf16.mxu0 0
    %574 = vmatpush1.bf16.msra.mxu0 0
    %575 = vmatprep.subr.bf16.mxu0 0
    %576 = vmatpush1.bf16.msra.mxu0 0
    %577 = vmatprep.subr.bf16.mxu0 0
    %578 = vmatpush1.bf16.msra.mxu0 0
    %579 = vmatprep.subr.bf16.mxu0 0
    %580 = vmatpush1.bf16.msra.mxu0 0
    %581 = vmatprep.subr.bf16.mxu0 0
    %582 = vmatpush1.bf16.msra.mxu0 0
    %583 = vmatprep.subr.bf16.mxu0 0
    %584 = vmatpush1.bf16.msra.mxu0 0
    %585 = vmatprep.subr.bf16.mxu0 0
    %586 = vmatpush1.bf16.msra.mxu0 0
    %587 = vmatprep.subr.bf16.mxu0 0
    %588 = vmatpush1.bf16.msra.mxu0 0
    %589 = vmatprep.subr.bf16.mxu0 0
    %590 = vmatpush1.bf16.msra.mxu0 0
    %591 = vmatprep.mubr.bf16.mxu0 0
    %592 = vmatmul.mubr.bf16.gmra.mrb[0].mxu0 %v533
    %v593 = vpop.f32.mrb[0].mxu0
    %v594 = vadd.f32 0.0, %v593
    %v595 = vpop.f32.mrb[0].mxu0
    %v596 = vpop.f32.mrb[0].mxu0
    %v597 = vadd.f32 0.0, %v596
    %v598 = vpop.f32.mrb[0].mxu0
    %599 = vmatprep.mubr.bf16.mxu0 0
    %600 = vmatmul.mubr.bf16.gmra.mrb[0].mxu0 %v536
    %v601 = vpop.f32.mrb[0].mxu0
    %v602 = vadd.f32 0.0, %v601
    %v603 = vpop.f32.mrb[0].mxu0
    %v604 = vpop.f32.mrb[0].mxu0
    %v605 = vadd.f32 0.0, %v604
    %v606 = vpop.f32.mrb[0].mxu0
    %607 = vmatprep.mubr.bf16.mxu0 0
    %608 = vmatmul.mubr.bf16.gmra.mrb[0].mxu0 %v539
    %v609 = vpop.f32.mrb[0].mxu0
    %v610 = vadd.f32 0.0, %v609
    %v611 = vpop.f32.mrb[0].mxu0
    %v612 = vpop.f32.mrb[0].mxu0
    %v613 = vadd.f32 0.0, %v612
    %v614 = vpop.f32.mrb[0].mxu0
    %615 = vmatprep.mubr.bf16.mxu0 0
    %616 = vmatmul.mubr.bf16.gmra.mrb[0].mxu0 %v542
    %v617 = vpop.f32.mrb[0].mxu0
    %v618 = vadd.f32 0.0, %v617
    %v619 = vpop.f32.mrb[0].mxu0
    %v620 = vpop.f32.mrb[0].mxu0
    %v621 = vadd.f32 0.0, %v620
    %v622 = vpop.f32.mrb[0].mxu0
    %623 = vmatprep.mubr.bf16.mxu0 0
    %624 = vmatmul.mubr.bf16.gmra.mrb[0].mxu0 %v545
    %v625 = vpop.f32.mrb[0].mxu0
    %v626 = vadd.f32 0.0, %v625
    %v627 = vpop.f32.mrb[0].mxu0
    %v628 = vpop.f32.mrb[0].mxu0
    %v629 = vadd.f32 0.0, %v628
    %v630 = vpop.f32.mrb[0].mxu0
    %631 = vmatprep.mubr.bf16.mxu0 0
    %632 = vmatmul.mubr.bf16.gmra.mrb[0].mxu0 %v548
    %v633 = vpop.f32.mrb[0].mxu0
    %v634 = vadd.f32 0.0, %v633
    %v635 = vpop.f32.mrb[0].mxu0
    %v636 = vpop.f32.mrb[0].mxu0
    %v637 = vadd.f32 0.0, %v636
    %v638 = vpop.f32.mrb[0].mxu0
    %639 = vmatprep.mubr.bf16.mxu0 0
    %640 = vmatmul.mubr.bf16.gmra.mrb[0].mxu0 %v551
    %v641 = vpop.f32.mrb[0].mxu0
    %v642 = vadd.f32 0.0, %v641
    %v643 = vpop.f32.mrb[0].mxu0
    %v644 = vpop.f32.mrb[0].mxu0
    %v645 = vadd.f32 0.0, %v644
    %v646 = vpop.f32.mrb[0].mxu0
    %647 = vmatprep.mubr.bf16.mxu0 0
    %648 = vmatmul.mubr.bf16.gmra.mrb[0].mxu0 %v554
    %v649 = vpop.f32.mrb[0].mxu0
    %v650 = vadd.f32 0.0, %v649
    %v651 = vpop.f32.mrb[0].mxu0
    %v652 = vpop.f32.mrb[0].mxu0
    %v653 = vadd.f32 0.0, %v652
    %v654 = vpop.f32.mrb[0].mxu0
    %655 = vmatprep.mubr.bf16.mxu0 0
    %656 = vmatmul.mubr.bf16.gmra.mrb[0].mxu0 %v557
    %v657 = vpop.f32.mrb[0].mxu0
    %v658 = vadd.f32 0.0, %v657
    %v659 = vpop.f32.mrb[0].mxu0
    %v660 = vpop.f32.mrb[0].mxu0
    %v661 = vpop.f32.mrb[0].mxu0
    %662 = vdwg.mxu0
    %v663 = vadd.f32 %v442, %v594
    %v664 = vadd.f32 %v443, %v597
    %v665 = vadd.f32 %v444, %v602
    %v666 = vadd.f32 %v445, %v605
    %v667 = vadd.f32 %v446, %v610
    %v668 = vadd.f32 %v447, %v613
    %v669 = vadd.f32 %v448, %v618
    %v670 = vadd.f32 %v449, %v621
    %v671 = vadd.f32 %v450, %v626
    %v672 = vadd.f32 %v451, %v629
    %v673 = vadd.f32 %v452, %v634
    %v674 = vadd.f32 %v453, %v637
    %v675 = vadd.f32 %v454, %v642
    %v676 = vadd.f32 %v455, %v645
    %v677 = vadd.f32 %v456, %v650
    %v678 = vadd.f32 %v457, %v653
    %v696 = vrot.slane %v594, 1
    %v697 = vrot.slane %v597, 1
    %v698 = vsel %vm262, %v696, %v697
    %v699 = vrot.slane %v602, 1
    %v700 = vsel %vm262, %v697, %v699
    %v701 = vrot.slane %v605, 1
    %v702 = vsel %vm262, %v699, %v701
    %v703 = vrot.slane %v610, 1
    %v704 = vsel %vm262, %v701, %v703
    %v705 = vrot.slane %v613, 1
    %v706 = vsel %vm262, %v703, %v705
    %v707 = vrot.slane %v618, 1
    %v708 = vsel %vm262, %v705, %v707
    %v709 = vrot.slane %v621, 1
    %v710 = vsel %vm262, %v707, %v709
    %v711 = vrot.slane %v626, 1
    %v712 = vsel %vm262, %v709, %v711
    %v713 = vrot.slane %v629, 1
    %v714 = vsel %vm262, %v711, %v713
    %v715 = vrot.slane %v634, 1
    %v716 = vsel %vm262, %v713, %v715
    %v717 = vrot.slane %v637, 1
    %v718 = vsel %vm262, %v715, %v717
    %v719 = vrot.slane %v642, 1
    %v720 = vsel %vm262, %v717, %v719
    %v721 = vrot.slane %v645, 1
    %v722 = vsel %vm262, %v719, %v721
    %v723 = vrot.slane %v650, 1
    %v724 = vsel %vm262, %v721, %v723
    %v725 = vrot.slane %v653, 1
    %v726 = vsel %vm262, %v723, %v725
    %v727 = vrot.slane %v658, 1
    %v728 = vsel %vm262, %v725, %v727
    %729 = vrot.lane.b32.xlu0 %v698, 96
    %v730 = vpop.permute.xlu0 %729
    %731 = vrot.lane.b32.xlu0 %v700, 96
    %v732 = vpop.permute.xlu0 %731
    %733 = vrot.lane.b32.xlu0 %v702, 96
    %v734 = vpop.permute.xlu0 %733
    %735 = vrot.lane.b32.xlu0 %v704, 96
    %v736 = vpop.permute.xlu0 %735
    %737 = vrot.lane.b32.xlu0 %v706, 96
    %v738 = vpop.permute.xlu0 %737
    %739 = vrot.lane.b32.xlu0 %v708, 96
    %v740 = vpop.permute.xlu0 %739
    %741 = vrot.lane.b32.xlu0 %v710, 96
    %v742 = vpop.permute.xlu0 %741
    %743 = vrot.lane.b32.xlu0 %v712, 96
    %v744 = vpop.permute.xlu0 %743
    %745 = vrot.lane.b32.xlu0 %v714, 96
    %v746 = vpop.permute.xlu0 %745
    %747 = vrot.lane.b32.xlu0 %v716, 96
    %v748 = vpop.permute.xlu0 %747
    %749 = vrot.lane.b32.xlu0 %v718, 96
    %v750 = vpop.permute.xlu0 %749
    %751 = vrot.lane.b32.xlu0 %v720, 96
    %v752 = vpop.permute.xlu0 %751
    %753 = vrot.lane.b32.xlu0 %v722, 96
    %v754 = vpop.permute.xlu0 %753
    %755 = vrot.lane.b32.xlu0 %v724, 96
    %v756 = vpop.permute.xlu0 %755
    %757 = vrot.lane.b32.xlu0 %v726, 96
    %v758 = vpop.permute.xlu0 %757
    %759 = vrot.lane.b32.xlu0 %v728, 96
    %v760 = vpop.permute.xlu0 %759
    %v777 = vadd.f32 %v663, %v730
    %v778 = vadd.f32 %v664, %v732
    %v779 = vadd.f32 %v665, %v734
    %v780 = vadd.f32 %v666, %v736
    %v781 = vadd.f32 %v667, %v738
    %v782 = vadd.f32 %v668, %v740
    %v783 = vadd.f32 %v669, %v742
    %v784 = vadd.f32 %v670, %v744
    %v785 = vadd.f32 %v671, %v746
    %v786 = vadd.f32 %v672, %v748
    %v787 = vadd.f32 %v673, %v750
    %v788 = vadd.f32 %v674, %v752
    %v789 = vadd.f32 %v675, %v754
    %v790 = vadd.f32 %v676, %v756
    %v791 = vadd.f32 %v677, %v758
    %v792 = vadd.f32 %v678, %v760
    %v793 = vrot.slane %v594, 2
    %v794 = vrot.slane %v597, 2
    %v795 = vsel %vm360, %v793, %v794
    %v796 = vrot.slane %v602, 2
    %v797 = vsel %vm360, %v794, %v796
    %v798 = vrot.slane %v605, 2
    %v799 = vsel %vm360, %v796, %v798
    %v800 = vrot.slane %v610, 2
    %v801 = vsel %vm360, %v798, %v800
    %v802 = vrot.slane %v613, 2
    %v803 = vsel %vm360, %v800, %v802
    %v804 = vrot.slane %v618, 2
    %v805 = vsel %vm360, %v802, %v804
    %v806 = vrot.slane %v621, 2
    %v807 = vsel %vm360, %v804, %v806
    %v808 = vrot.slane %v626, 2
    %v809 = vsel %vm360, %v806, %v808
    %v810 = vrot.slane %v629, 2
    %v811 = vsel %vm360, %v808, %v810
    %v812 = vrot.slane %v634, 2
    %v813 = vsel %vm360, %v810, %v812
    %v814 = vrot.slane %v637, 2
    %v815 = vsel %vm360, %v812, %v814
    %v816 = vrot.slane %v642, 2
    %v817 = vsel %vm360, %v814, %v816
    %v818 = vrot.slane %v645, 2
    %v819 = vsel %vm360, %v816, %v818
    %v820 = vrot.slane %v650, 2
    %v821 = vsel %vm360, %v818, %v820
    %v822 = vrot.slane %v653, 2
    %v823 = vsel %vm360, %v820, %v822
    %v824 = vrot.slane %v658, 2
    %v825 = vsel %vm360, %v822, %v824
    %826 = vrot.lane.b32.xlu0 %v795, 64
    %v827 = vpop.permute.xlu0 %826
    %828 = vrot.lane.b32.xlu0 %v797, 64
    %v829 = vpop.permute.xlu0 %828
    %830 = vrot.lane.b32.xlu0 %v799, 64
    %v831 = vpop.permute.xlu0 %830
    %832 = vrot.lane.b32.xlu0 %v801, 64
    %v833 = vpop.permute.xlu0 %832
    %834 = vrot.lane.b32.xlu0 %v803, 64
    %v835 = vpop.permute.xlu0 %834
    %836 = vrot.lane.b32.xlu0 %v805, 64
    %v837 = vpop.permute.xlu0 %836
    %838 = vrot.lane.b32.xlu0 %v807, 64
    %v839 = vpop.permute.xlu0 %838
    %840 = vrot.lane.b32.xlu0 %v809, 64
    %v841 = vpop.permute.xlu0 %840
    %842 = vrot.lane.b32.xlu0 %v811, 64
    %v843 = vpop.permute.xlu0 %842
    %844 = vrot.lane.b32.xlu0 %v813, 64
    %v845 = vpop.permute.xlu0 %844
    %846 = vrot.lane.b32.xlu0 %v815, 64
    %v847 = vpop.permute.xlu0 %846
    %848 = vrot.lane.b32.xlu0 %v817, 64
    %v849 = vpop.permute.xlu0 %848
    %850 = vrot.lane.b32.xlu0 %v819, 64
    %v851 = vpop.permute.xlu0 %850
    %852 = vrot.lane.b32.xlu0 %v821, 64
    %v853 = vpop.permute.xlu0 %852
    %854 = vrot.lane.b32.xlu0 %v823, 64
    %v855 = vpop.permute.xlu0 %854
    %856 = vrot.lane.b32.xlu0 %v825, 64
    %v857 = vpop.permute.xlu0 %856
    %v874 = vadd.f32 %v777, %v827
    %v875 = vadd.f32 %v778, %v829
    %v876 = vadd.f32 %v779, %v831
    %v877 = vadd.f32 %v780, %v833
    %v878 = vadd.f32 %v781, %v835
    %v879 = vadd.f32 %v782, %v837
    %v880 = vadd.f32 %v783, %v839
    %v881 = vadd.f32 %v784, %v841
    %v882 = vadd.f32 %v785, %v843
    %v883 = vadd.f32 %v786, %v845
    %v884 = vadd.f32 %v787, %v847
    %v885 = vadd.f32 %v788, %v849
    %v886 = vadd.f32 %v789, %v851
    %v887 = vadd.f32 %v790, %v853
    %v888 = vadd.f32 %v791, %v855
    %v889 = vadd.f32 %v792, %v857
    %s890 = sadd.s32 %s24, 32
    %s891 = sshra.s32 %s890, 3
    %s892 = sand.u32 %s890, 7
    %s893 = smul.addr %s891, 4
    %s894 = scalar_lea.vmem %s0, %s893
    %v895 = vld [vmem:[%s894] sm:$0xf]
    %v896 = vld [vmem:[%s894 + $0x4] sm:$0xf]
    %v897 = vld [vmem:[%s894 + $0x8] sm:$0xf]
    %v898 = vld [vmem:[%s894 + $0xc] sm:$0xf]
    %v899 = vld [vmem:[%s894 + $0x10] sm:$0xf]
    %v900 = vld [vmem:[%s894 + $0x14] sm:$0xf]
    %v901 = vld [vmem:[%s894 + $0x18] sm:$0xf]
    %v902 = vld [vmem:[%s894 + $0x1c] sm:$0xf]
    %v903 = vld [vmem:[%s894 + $0x20] sm:$0xf]
    %v904 = vld [vmem:[%s894 + $0x24] sm:$0xf]
    %v905 = vld [vmem:[%s894 + $0x28] sm:$0xf]
    %v906 = vld [vmem:[%s894 + $0x2c] sm:$0xf]
    %v907 = vld [vmem:[%s894 + $0x30] sm:$0xf]
    %v908 = vld [vmem:[%s894 + $0x34] sm:$0xf]
    %v909 = vld [vmem:[%s894 + $0x38] sm:$0xf]
    %v910 = vld [vmem:[%s894 + $0x3c] sm:$0xf]
    %v911 = vld [vmem:[%s894 + $0x40] sm:$0xf]
    %s912 = scalar_lea.vmem %s1, 16
    %v913 = vld [vmem:[%s912] sm:$0xf]
    %v914 = vld [vmem:[%s912 + $0x4] sm:$0xf]
    %v932 = vunpack.c.l.b16 %v895
    %v933 = vunpack.c.l.b16 %v896
    %v934 = vunpack.c.l.b16 %v897
    %v935 = vunpack.c.l.b16 %v898
    %v936 = vunpack.c.l.b16 %v899
    %v937 = vunpack.c.l.b16 %v900
    %v938 = vunpack.c.l.b16 %v901
    %v939 = vunpack.c.l.b16 %v902
    %v940 = vunpack.c.l.b16 %v903
    %v941 = vunpack.c.l.b16 %v904
    %v942 = vunpack.c.l.b16 %v905
    %v943 = vunpack.c.l.b16 %v906
    %v944 = vunpack.c.l.b16 %v907
    %v945 = vunpack.c.l.b16 %v908
    %v946 = vunpack.c.l.b16 %v909
    %v947 = vunpack.c.l.b16 %v910
    %v948 = vunpack.c.l.b16 %v911
    %v949 = vpack.c.b16 %v933, %v932
    %v950 = vpack.c.b16 %v935, %v934
    %v951 = vpack.c.b16 %v937, %v936
    %v952 = vpack.c.b16 %v939, %v938
    %v953 = vpack.c.b16 %v941, %v940
    %v954 = vpack.c.b16 %v943, %v942
    %v955 = vpack.c.b16 %v945, %v944
    %v956 = vpack.c.b16 %v947, %v946
    %v957 = vpack.c.b16 %v948, %v948
    %v960 = vunpack.c.l.b16 %v913
    %v961 = vunpack.c.l.b16 %v914
    %v962 = vpack.c.b16 %v961, %v960
    %v965 = vsel %vm97, %v949, 0
    %v968 = vsel %vm97, %v950, 0
    %v971 = vsel %vm97, %v951, 0
    %v974 = vsel %vm97, %v952, 0
    %v977 = vsel %vm97, %v953, 0
    %v980 = vsel %vm97, %v954, 0
    %v983 = vsel %vm97, %v955, 0
    %v986 = vsel %vm97, %v956, 0
    %v989 = vsel %vm97, %v957, 0
    %991 = vmatprep.subr.bf16.mxu0 0
    %992 = vmatpush1.bf16.msra.mxu0 %v962
    %993 = vmatprep.subr.bf16.mxu0 0
    %994 = vmatpush1.bf16.msra.mxu0 0
    %995 = vmatprep.subr.bf16.mxu0 0
    %996 = vmatpush1.bf16.msra.mxu0 0
    %997 = vmatprep.subr.bf16.mxu0 0
    %998 = vmatpush1.bf16.msra.mxu0 0
    %999 = vmatprep.subr.bf16.mxu0 0
    %1000 = vmatpush1.bf16.msra.mxu0 0
    %1001 = vmatprep.subr.bf16.mxu0 0
    %1002 = vmatpush1.bf16.msra.mxu0 0
    %1003 = vmatprep.subr.bf16.mxu0 0
    %1004 = vmatpush1.bf16.msra.mxu0 0
    %1005 = vmatprep.subr.bf16.mxu0 0
    %1006 = vmatpush1.bf16.msra.mxu0 0
    %1007 = vmatprep.subr.bf16.mxu0 0
    %1008 = vmatpush1.bf16.msra.mxu0 0
    %1009 = vmatprep.subr.bf16.mxu0 0
    %1010 = vmatpush1.bf16.msra.mxu0 0
    %1011 = vmatprep.subr.bf16.mxu0 0
    %1012 = vmatpush1.bf16.msra.mxu0 0
    %1013 = vmatprep.subr.bf16.mxu0 0
    %1014 = vmatpush1.bf16.msra.mxu0 0
    %1015 = vmatprep.subr.bf16.mxu0 0
    %1016 = vmatpush1.bf16.msra.mxu0 0
    %1017 = vmatprep.subr.bf16.mxu0 0
    %1018 = vmatpush1.bf16.msra.mxu0 0
    %1019 = vmatprep.subr.bf16.mxu0 0
    %1020 = vmatpush1.bf16.msra.mxu0 0
    %1021 = vmatprep.subr.bf16.mxu0 0
    %1022 = vmatpush1.bf16.msra.mxu0 0
    %1023 = vmatprep.mubr.bf16.mxu0 0
    %1024 = vmatmul.mubr.bf16.gmra.mrb[0].mxu0 %v965
    %v1025 = vpop.f32.mrb[0].mxu0
    %v1026 = vadd.f32 0.0, %v1025
    %v1027 = vpop.f32.mrb[0].mxu0
    %v1028 = vpop.f32.mrb[0].mxu0
    %v1029 = vadd.f32 0.0, %v1028
    %v1030 = vpop.f32.mrb[0].mxu0
    %1031 = vmatprep.mubr.bf16.mxu0 0
    %1032 = vmatmul.mubr.bf16.gmra.mrb[0].mxu0 %v968
    %v1033 = vpop.f32.mrb[0].mxu0
    %v1034 = vadd.f32 0.0, %v1033
    %v1035 = vpop.f32.mrb[0].mxu0
    %v1036 = vpop.f32.mrb[0].mxu0
    %v1037 = vadd.f32 0.0, %v1036
    %v1038 = vpop.f32.mrb[0].mxu0
    %1039 = vmatprep.mubr.bf16.mxu0 0
    %1040 = vmatmul.mubr.bf16.gmra.mrb[0].mxu0 %v971
    %v1041 = vpop.f32.mrb[0].mxu0
    %v1042 = vadd.f32 0.0, %v1041
    %v1043 = vpop.f32.mrb[0].mxu0
    %v1044 = vpop.f32.mrb[0].mxu0
    %v1045 = vadd.f32 0.0, %v1044
    %v1046 = vpop.f32.mrb[0].mxu0
    %1047 = vmatprep.mubr.bf16.mxu0 0
    %1048 = vmatmul.mubr.bf16.gmra.mrb[0].mxu0 %v974
    %v1049 = vpop.f32.mrb[0].mxu0
    %v1050 = vadd.f32 0.0, %v1049
    %v1051 = vpop.f32.mrb[0].mxu0
    %v1052 = vpop.f32.mrb[0].mxu0
    %v1053 = vadd.f32 0.0, %v1052
    %v1054 = vpop.f32.mrb[0].mxu0
    %1055 = vmatprep.mubr.bf16.mxu0 0
    %1056 = vmatmul.mubr.bf16.gmra.mrb[0].mxu0 %v977
    %v1057 = vpop.f32.mrb[0].mxu0
    %v1058 = vadd.f32 0.0, %v1057
    %v1059 = vpop.f32.mrb[0].mxu0
    %v1060 = vpop.f32.mrb[0].mxu0
    %v1061 = vadd.f32 0.0, %v1060
    %v1062 = vpop.f32.mrb[0].mxu0
    %1063 = vmatprep.mubr.bf16.mxu0 0
    %1064 = vmatmul.mubr.bf16.gmra.mrb[0].mxu0 %v980
    %v1065 = vpop.f32.mrb[0].mxu0
    %v1066 = vadd.f32 0.0, %v1065
    %v1067 = vpop.f32.mrb[0].mxu0
    %v1068 = vpop.f32.mrb[0].mxu0
    %v1069 = vadd.f32 0.0, %v1068
    %v1070 = vpop.f32.mrb[0].mxu0
    %1071 = vmatprep.mubr.bf16.mxu0 0
    %1072 = vmatmul.mubr.bf16.gmra.mrb[0].mxu0 %v983
    %v1073 = vpop.f32.mrb[0].mxu0
    %v1074 = vadd.f32 0.0, %v1073
    %v1075 = vpop.f32.mrb[0].mxu0
    %v1076 = vpop.f32.mrb[0].mxu0
    %v1077 = vadd.f32 0.0, %v1076
    %v1078 = vpop.f32.mrb[0].mxu0
    %1079 = vmatprep.mubr.bf16.mxu0 0
    %1080 = vmatmul.mubr.bf16.gmra.mrb[0].mxu0 %v986
    %v1081 = vpop.f32.mrb[0].mxu0
    %v1082 = vadd.f32 0.0, %v1081
    %v1083 = vpop.f32.mrb[0].mxu0
    %v1084 = vpop.f32.mrb[0].mxu0
    %v1085 = vadd.f32 0.0, %v1084
    %v1086 = vpop.f32.mrb[0].mxu0
    %1087 = vmatprep.mubr.bf16.mxu0 0
    %1088 = vmatmul.mubr.bf16.gmra.mrb[0].mxu0 %v989
    %v1089 = vpop.f32.mrb[0].mxu0
    %v1090 = vadd.f32 0.0, %v1089
    %v1091 = vpop.f32.mrb[0].mxu0
    %v1092 = vpop.f32.mrb[0].mxu0
    %v1093 = vpop.f32.mrb[0].mxu0
    %1094 = vdwg.mxu0
    %v1095 = vadd.f32 %v874, %v1026
    %v1096 = vadd.f32 %v875, %v1029
    %v1097 = vadd.f32 %v876, %v1034
    %v1098 = vadd.f32 %v877, %v1037
    %v1099 = vadd.f32 %v878, %v1042
    %v1100 = vadd.f32 %v879, %v1045
    %v1101 = vadd.f32 %v880, %v1050
    %v1102 = vadd.f32 %v881, %v1053
    %v1103 = vadd.f32 %v882, %v1058
    %v1104 = vadd.f32 %v883, %v1061
    %v1105 = vadd.f32 %v884, %v1066
    %v1106 = vadd.f32 %v885, %v1069
    %v1107 = vadd.f32 %v886, %v1074
    %v1108 = vadd.f32 %v887, %v1077
    %v1109 = vadd.f32 %v888, %v1082
    %v1110 = vadd.f32 %v889, %v1085
    %v1128 = vrot.slane %v1026, 1
    %v1129 = vrot.slane %v1029, 1
    %v1130 = vsel %vm262, %v1128, %v1129
    %v1131 = vrot.slane %v1034, 1
    %v1132 = vsel %vm262, %v1129, %v1131
    %v1133 = vrot.slane %v1037, 1
    %v1134 = vsel %vm262, %v1131, %v1133
    %v1135 = vrot.slane %v1042, 1
    %v1136 = vsel %vm262, %v1133, %v1135
    %v1137 = vrot.slane %v1045, 1
    %v1138 = vsel %vm262, %v1135, %v1137
    %v1139 = vrot.slane %v1050, 1
    %v1140 = vsel %vm262, %v1137, %v1139
    %v1141 = vrot.slane %v1053, 1
    %v1142 = vsel %vm262, %v1139, %v1141
    %v1143 = vrot.slane %v1058, 1
    %v1144 = vsel %vm262, %v1141, %v1143
    %v1145 = vrot.slane %v1061, 1
    %v1146 = vsel %vm262, %v1143, %v1145
    %v1147 = vrot.slane %v1066, 1
    %v1148 = vsel %vm262, %v1145, %v1147
    %v1149 = vrot.slane %v1069, 1
    %v1150 = vsel %vm262, %v1147, %v1149
    %v1151 = vrot.slane %v1074, 1
    %v1152 = vsel %vm262, %v1149, %v1151
    %v1153 = vrot.slane %v1077, 1
    %v1154 = vsel %vm262, %v1151, %v1153
    %v1155 = vrot.slane %v1082, 1
    %v1156 = vsel %vm262, %v1153, %v1155
    %v1157 = vrot.slane %v1085, 1
    %v1158 = vsel %vm262, %v1155, %v1157
    %v1159 = vrot.slane %v1090, 1
    %v1160 = vsel %vm262, %v1157, %v1159
    %1161 = vrot.lane.b32.xlu0 %v1130, 96
    %v1162 = vpop.permute.xlu0 %1161
    %1163 = vrot.lane.b32.xlu0 %v1132, 96
    %v1164 = vpop.permute.xlu0 %1163
    %1165 = vrot.lane.b32.xlu0 %v1134, 96
    %v1166 = vpop.permute.xlu0 %1165
    %1167 = vrot.lane.b32.xlu0 %v1136, 96
    %v1168 = vpop.permute.xlu0 %1167
    %1169 = vrot.lane.b32.xlu0 %v1138, 96
    %v1170 = vpop.permute.xlu0 %1169
    %1171 = vrot.lane.b32.xlu0 %v1140, 96
    %v1172 = vpop.permute.xlu0 %1171
    %1173 = vrot.lane.b32.xlu0 %v1142, 96
    %v1174 = vpop.permute.xlu0 %1173
    %1175 = vrot.lane.b32.xlu0 %v1144, 96
    %v1176 = vpop.permute.xlu0 %1175
    %1177 = vrot.lane.b32.xlu0 %v1146, 96
    %v1178 = vpop.permute.xlu0 %1177
    %1179 = vrot.lane.b32.xlu0 %v1148, 96
    %v1180 = vpop.permute.xlu0 %1179
    %1181 = vrot.lane.b32.xlu0 %v1150, 96
    %v1182 = vpop.permute.xlu0 %1181
    %1183 = vrot.lane.b32.xlu0 %v1152, 96
    %v1184 = vpop.permute.xlu0 %1183
    %1185 = vrot.lane.b32.xlu0 %v1154, 96
    %v1186 = vpop.permute.xlu0 %1185
    %1187 = vrot.lane.b32.xlu0 %v1156, 96
    %v1188 = vpop.permute.xlu0 %1187
    %1189 = vrot.lane.b32.xlu0 %v1158, 96
    %v1190 = vpop.permute.xlu0 %1189
    %1191 = vrot.lane.b32.xlu0 %v1160, 96
    %v1192 = vpop.permute.xlu0 %1191
    %v1209 = vadd.f32 %v1095, %v1162
    %v1210 = vadd.f32 %v1096, %v1164
    %v1211 = vadd.f32 %v1097, %v1166
    %v1212 = vadd.f32 %v1098, %v1168
    %v1213 = vadd.f32 %v1099, %v1170
    %v1214 = vadd.f32 %v1100, %v1172
    %v1215 = vadd.f32 %v1101, %v1174
    %v1216 = vadd.f32 %v1102, %v1176
    %v1217 = vadd.f32 %v1103, %v1178
    %v1218 = vadd.f32 %v1104, %v1180
    %v1219 = vadd.f32 %v1105, %v1182
    %v1220 = vadd.f32 %v1106, %v1184
    %v1221 = vadd.f32 %v1107, %v1186
    %v1222 = vadd.f32 %v1108, %v1188
    %v1223 = vadd.f32 %v1109, %v1190
    %v1224 = vadd.f32 %v1110, %v1192
    %v1225 = vrot.slane %v1026, 2
    %v1226 = vrot.slane %v1029, 2
    %v1227 = vsel %vm360, %v1225, %v1226
    %v1228 = vrot.slane %v1034, 2
    %v1229 = vsel %vm360, %v1226, %v1228
    %v1230 = vrot.slane %v1037, 2
    %v1231 = vsel %vm360, %v1228, %v1230
    %v1232 = vrot.slane %v1042, 2
    %v1233 = vsel %vm360, %v1230, %v1232
    %v1234 = vrot.slane %v1045, 2
    %v1235 = vsel %vm360, %v1232, %v1234
    %v1236 = vrot.slane %v1050, 2
    %v1237 = vsel %vm360, %v1234, %v1236
    %v1238 = vrot.slane %v1053, 2
    %v1239 = vsel %vm360, %v1236, %v1238
    %v1240 = vrot.slane %v1058, 2
    %v1241 = vsel %vm360, %v1238, %v1240
    %v1242 = vrot.slane %v1061, 2
    %v1243 = vsel %vm360, %v1240, %v1242
    %v1244 = vrot.slane %v1066, 2
    %v1245 = vsel %vm360, %v1242, %v1244
    %v1246 = vrot.slane %v1069, 2
    %v1247 = vsel %vm360, %v1244, %v1246
    %v1248 = vrot.slane %v1074, 2
    %v1249 = vsel %vm360, %v1246, %v1248
    %v1250 = vrot.slane %v1077, 2
    %v1251 = vsel %vm360, %v1248, %v1250
    %v1252 = vrot.slane %v1082, 2
    %v1253 = vsel %vm360, %v1250, %v1252
    %v1254 = vrot.slane %v1085, 2
    %v1255 = vsel %vm360, %v1252, %v1254
    %v1256 = vrot.slane %v1090, 2
    %v1257 = vsel %vm360, %v1254, %v1256
    %1258 = vrot.lane.b32.xlu0 %v1227, 64
    %v1259 = vpop.permute.xlu0 %1258
    %1260 = vrot.lane.b32.xlu0 %v1229, 64
    %v1261 = vpop.permute.xlu0 %1260
    %1262 = vrot.lane.b32.xlu0 %v1231, 64
    %v1263 = vpop.permute.xlu0 %1262
    %1264 = vrot.lane.b32.xlu0 %v1233, 64
    %v1265 = vpop.permute.xlu0 %1264
    %1266 = vrot.lane.b32.xlu0 %v1235, 64
    %v1267 = vpop.permute.xlu0 %1266
    %1268 = vrot.lane.b32.xlu0 %v1237, 64
    %v1269 = vpop.permute.xlu0 %1268
    %1270 = vrot.lane.b32.xlu0 %v1239, 64
    %v1271 = vpop.permute.xlu0 %1270
    %1272 = vrot.lane.b32.xlu0 %v1241, 64
    %v1273 = vpop.permute.xlu0 %1272
    %1274 = vrot.lane.b32.xlu0 %v1243, 64
    %v1275 = vpop.permute.xlu0 %1274
    %1276 = vrot.lane.b32.xlu0 %v1245, 64
    %v1277 = vpop.permute.xlu0 %1276
    %1278 = vrot.lane.b32.xlu0 %v1247, 64
    %v1279 = vpop.permute.xlu0 %1278
    %1280 = vrot.lane.b32.xlu0 %v1249, 64
    %v1281 = vpop.permute.xlu0 %1280
    %1282 = vrot.lane.b32.xlu0 %v1251, 64
    %v1283 = vpop.permute.xlu0 %1282
    %1284 = vrot.lane.b32.xlu0 %v1253, 64
    %v1285 = vpop.permute.xlu0 %1284
    %1286 = vrot.lane.b32.xlu0 %v1255, 64
    %v1287 = vpop.permute.xlu0 %1286
    %1288 = vrot.lane.b32.xlu0 %v1257, 64
    %v1289 = vpop.permute.xlu0 %1288
    %v1306 = vadd.f32 %v1209, %v1259
    %v1307 = vadd.f32 %v1210, %v1261
    %v1308 = vadd.f32 %v1211, %v1263
    %v1309 = vadd.f32 %v1212, %v1265
    %v1310 = vadd.f32 %v1213, %v1267
    %v1311 = vadd.f32 %v1214, %v1269
    %v1312 = vadd.f32 %v1215, %v1271
    %v1313 = vadd.f32 %v1216, %v1273
    %v1314 = vadd.f32 %v1217, %v1275
    %v1315 = vadd.f32 %v1218, %v1277
    %v1316 = vadd.f32 %v1219, %v1279
    %v1317 = vadd.f32 %v1220, %v1281
    %v1318 = vadd.f32 %v1221, %v1283
    %v1319 = vadd.f32 %v1222, %v1285
    %v1320 = vadd.f32 %v1223, %v1287
    %v1321 = vadd.f32 %v1224, %v1289
    %v1323 = vlaneseq
    %v1324 = vshrl.u32 %v1323, 7
    %v1325 = vsub.s32 0, %v1324
    %v1326 = vrot.slane %v16, %v1325
    %v1328 = vadd.f32 %v1306, %v1326
    %v1329 = vadd.f32 %v1307, %v1326
    %v1330 = vadd.f32 %v1308, %v1326
    %v1331 = vadd.f32 %v1309, %v1326
    %v1332 = vadd.f32 %v1310, %v1326
    %v1333 = vadd.f32 %v1311, %v1326
    %v1334 = vadd.f32 %v1312, %v1326
    %v1335 = vadd.f32 %v1313, %v1326
    %v1336 = vadd.f32 %v1314, %v1326
    %v1337 = vadd.f32 %v1315, %v1326
    %v1338 = vadd.f32 %v1316, %v1326
    %v1339 = vadd.f32 %v1317, %v1326
    %v1340 = vadd.f32 %v1318, %v1326
    %v1341 = vadd.f32 %v1319, %v1326
    %v1342 = vadd.f32 %v1320, %v1326
    %v1343 = vadd.f32 %v1321, %v1326
    %s1344 = scalar_lea.vmem %s3, %s23
    %vm1345 = vcmask 261120
    %1346 = vst.msk [vmem:[%s1344] sm:$0xff] %vm1345, %v1328
    %1347 = vst.msk [vmem:[%s1344 + $0x8] sm:$0xff] %vm1345, %v1329
    %1348 = vst.msk [vmem:[%s1344 + $0x10] sm:$0xff] %vm1345, %v1330
    %1349 = vst.msk [vmem:[%s1344 + $0x18] sm:$0xff] %vm1345, %v1331
    %1350 = vst.msk [vmem:[%s1344 + $0x20] sm:$0xff] %vm1345, %v1332
    %1351 = vst.msk [vmem:[%s1344 + $0x28] sm:$0xff] %vm1345, %v1333
    %1352 = vst.msk [vmem:[%s1344 + $0x30] sm:$0xff] %vm1345, %v1334
    %1353 = vst.msk [vmem:[%s1344 + $0x38] sm:$0xff] %vm1345, %v1335
    %1354 = vst.msk [vmem:[%s1344 + $0x40] sm:$0xff] %vm1345, %v1336
    %1355 = vst.msk [vmem:[%s1344 + $0x48] sm:$0xff] %vm1345, %v1337
    %1356 = vst.msk [vmem:[%s1344 + $0x50] sm:$0xff] %vm1345, %v1338
    %1357 = vst.msk [vmem:[%s1344 + $0x58] sm:$0xff] %vm1345, %v1339
    %1358 = vst.msk [vmem:[%s1344 + $0x60] sm:$0xff] %vm1345, %v1340
    %1359 = vst.msk [vmem:[%s1344 + $0x68] sm:$0xff] %vm1345, %v1341
    %1360 = vst.msk [vmem:[%s1344 + $0x70] sm:$0xff] %vm1345, %v1342
    %1361 = vst.msk [vmem:[%s1344 + $0x78] sm:$0xff] %vm1345, %v1343
  $region18: #{tpu_custom_call.1} parent=0 // loop_footer
    %s22 = sadd.s32 1, %s18
  $region19: #{tpu_custom_call.1} parent=0 // loop_footer_branch
    %17 = sbr.rel target = $region15
  $region20: #{tpu_custom_call.1} parent=0 // loop_exit
    _
  // Predicated region
  $region21: #{tpu_custom_call.1} parent=0 // pred_check
    _
  $region22: #{tpu_custom_call.1} parent=0 // pred_check_branch
    %1363 = sbr.rel (0) target = $region24
  $region23: #{tpu_custom_call.1} parent=0 // pred_region
    _
  $region24: #{tpu_custom_call.1} parent=0 // pred_fallthru
    _
  // Predicated region
  $region25: #{tpu_custom_call.1} parent=0 // pred_check
    _
  $region26: #{tpu_custom_call.1} parent=0 // pred_check_branch
    %1365 = sbr.rel (0) target = $region28
  $region27: #{tpu_custom_call.1} parent=0 // pred_region
    _
  $region28: #{tpu_custom_call.1} parent=0 // pred_fallthru
    _

</llo_original>
